<compile_context>
chip_gen: v7x
topology: tpu7x:2x2x1
jax: 0.10.0
libtpu: 0.0.40
codegen_flags: <defaults>
</compile_context>

<pallas_src>
import functools

import jax
import jax.numpy as jnp
from jax import lax
from jax.experimental import pallas as pl
from jax.experimental.pallas import tpu as pltpu


# ------------------------------- helpers ------------------------------------

def _round_up(v, m):
    return ((v + m - 1) // m) * m


def _vmem_ceiling_bytes():
    """Per-generation VMEM ceiling (with headroom for compiler scratch)."""
    try:
        info = pltpu.get_tpu_info()
        cap = int(getattr(info, "vmem_capacity_bytes", 0)) or 64 * 2**20
    except Exception:           # no TPU info available -> assume v7x (64 MiB)
        cap = 64 * 2**20
    return (cap * 7) // 8


def _compiler_params(dimension_semantics, block_bytes):
    ceiling = _vmem_ceiling_bytes()
    limit = int(min(max(32 * 2**20, 4 * int(block_bytes)), ceiling))
    return pltpu.CompilerParams(
        dimension_semantics=tuple(dimension_semantics),
        vmem_limit_bytes=limit,
    )


# ----------------------------- Pallas kernels -------------------------------

def _conv1d_kernel(x_ref, w_ref, b_ref, o_ref, xpad_ref, *,
                   ksize, cin, tl, stride, ext, fill_off, tap0, seq_len):
    # x_ref    : (1, Cin, L)      f32   full (unpadded) row for this batch elem
    # w_ref    : (Cout, K*Cin_p)  bf16  taps folded into the contraction dim
    # b_ref    : (Cout, 1)        f32
    # o_ref    : (1, Cout, TL)          lane-dense output tile (NCL layout)
    # xpad_ref : (Cin_p, Lpad)    f32   zero-padded row scratch (built at j==0)
    j = pl.program_id(1)

    # Build the zero-padded input row in VMEM once per batch element.  This
    # fuses the pad (and, downstream, the bf16 cast) into the kernel so the
    # wrapper never runs separate pad/astype HBM passes.  The fill offset is
    # 128-aligned so only standard aligned stores (with masked tails) occur.
    @pl.when(j == 0)
    def _():
        xpad_ref[...] = jnp.zeros_like(xpad_ref)
        xpad_ref[:cin, fill_off:fill_off + seq_len] = x_ref[0]

    if stride == 1:
        base = pl.multiple_of(j * tl, 128)
        chunk = xpad_ref[:, pl.ds(base, ext)]          # one aligned (Cin_p, ext) load
        taps = [chunk[:, tap0 + k: tap0 + k + tl] for k in range(ksize)]
    else:
        # TODO(synk): stride>1 path uses strided lane reads (correct but slow);
        # not exercised in __main__.
        base = j * tl * stride
        taps = [xpad_ref[:, pl.ds(base + tap0 + k, tl, stride=stride)]
                for k in range(ksize)]

    # Tile-aligned stack (each tap is a full 8-row f32 sublane tile) -> one
    # MXU matmul with a K*Cin_p contraction instead of K tiny per-tap dots.
    stacked = taps[0] if ksize == 1 else jnp.concatenate(taps, axis=0)
    acc = jnp.dot(w_ref[...], stacked.astype(jnp.bfloat16),
                  preferred_element_type=jnp.float32)   # (Cout, TL) f32
    o_ref[...] = (acc + b_ref[...])[None].astype(o_ref.dtype)


def _gn_lrelu_kernel(y_ref, g_ref, b_ref, o_ref, *, num_groups, eps, neg_slope):
    # y_ref/o_ref: (1, C, L); g_ref/b_ref: (C, 1).  All stats math in f32.
    C = y_ref.shape[1]
    Cg = C // num_groups
    y = y_ref[0].astype(jnp.float32)                        # (C, L) lane-dense
    gid = lax.broadcasted_iota(jnp.int32, (C, 1), 0) // Cg  # row -> group id
    mean_r = jnp.zeros((C, 1), jnp.float32)
    var_r = jnp.zeros((C, 1), jnp.float32)
    for g in range(num_groups):                             # static unroll
        yg = y[g * Cg:(g + 1) * Cg, :]
        m = jnp.mean(yg, keepdims=True)                     # (1, 1)
        v = jnp.mean(jnp.square(yg - m), keepdims=True)     # (1, 1)
        mean_r = jnp.where(gid == g, m, mean_r)
        var_r = jnp.where(gid == g, v, var_r)
    yhat = (y - mean_r) * lax.rsqrt(var_r + eps)
    out = yhat * g_ref[...] + b_ref[...]
    out = jnp.where(out >= 0, out, neg_slope * out)         # LeakyReLU(0.2)
    o_ref[0] = out.astype(o_ref.dtype)


# ------------------------------- wrappers ------------------------------------

def conv1d_pallas(x, weight, bias, *, stride, padding, tile_l=512):
    """Conv1d (NCL input, OIK weight) with lane-dense (Cout, TL) output tiles."""
    N, Cin, L = x.shape
    Cout, Cin_w, K = weight.shape
    assert Cin_w == Cin
    S, P = int(stride), int(padding)
    Lo = (L + 2 * P - K) // S + 1
    assert Lo > 0

    out_dtype = x.dtype
    item_out = jnp.dtype(out_dtype).itemsize

    Cin_p = _round_up(Cin, 8)          # pad Cin to a full f32 sublane tile
    PADL = _round_up(P, 128)           # 128-aligned left-pad offset in scratch
    tap0 = PADL - P                    # static tap offset inside the chunk
    extra = tap0 + K - 1               # halo needed beyond TL in the chunk

    def geometry(tl):
        nt = (Lo + tl - 1) // tl
        if S == 1:
            ext = tl + (_round_up(extra, 128) if extra > 0 else 0)
            lpad = (nt - 1) * tl + ext
        else:
            ext = 0
            lpad = tap0 + (nt * tl - 1) * S + K
        lpad = _round_up(max(lpad, PADL + L), 128)
        return nt, ext, lpad

    def vmem_bytes(tl):
        _, ext, lpad = geometry(tl)
        return (2 * Cin * L * 4                      # double-buffered f32 input row
                + Cin_p * lpad * 4                   # zero-padded row scratch (f32)
                + 2 * Cout * (K * Cin_p) * 2         # folded bf16 weights
                + 2 * Cout * 4                       # bias
                + 2 * Cout * tl * item_out           # double-buffered output tile
                + 4 * (Cin_p * max(ext, tl) + (K * Cin_p + Cout) * tl))  # live values

    # Lane-dense tile length (multiple of 128), shrunk until it fits a
    # conservative VMEM budget (review: size against v7x's 64 MiB).
    TL = max(128, (int(tile_l) // 128) * 128)
    TL = min(TL, _round_up(Lo, 128))
    budget = min(24 * 2**20, _vmem_ceiling_bytes() // 2)
    while TL > 128 and vmem_bytes(TL) > budget:
        TL -= 128
    num_tiles, ext, Lpad = geometry(TL)

    # Fold the K taps into the contraction dim: (Cout, K*Cin_p), bf16.
    wt = jnp.transpose(weight, (0, 2, 1))                    # (Cout, K, Cin)
    wt = jnp.pad(wt, ((0, 0), (0, 0), (0, Cin_p - Cin)))
    w_f = wt.reshape(Cout, K * Cin_p).astype(jnp.bfloat16)
    b2 = bias.reshape(Cout, 1).astype(jnp.float32)

    out = pl.pallas_call(
        functools.partial(_conv1d_kernel, ksize=K, cin=Cin, tl=TL, stride=S,
                          ext=ext, fill_off=PADL, tap0=tap0, seq_len=L),
        # Exact output length: Pallas clips the partial trailing block on
        # writeback, so no post-hoc slice (no extra HBM pass).
        out_shape=jax.ShapeDtypeStruct((N, Cout, Lo), out_dtype),
        grid=(N, num_tiles),
        in_specs=[
            pl.BlockSpec((1, Cin, L), lambda n, j: (n, 0, 0)),       # raw f32 row
            pl.BlockSpec((Cout, K * Cin_p), lambda n, j: (0, 0)),    # folded weights
            pl.BlockSpec((Cout, 1), lambda n, j: (0, 0)),            # bias
        ],
        out_specs=pl.BlockSpec((1, Cout, TL), lambda n, j: (n, 0, j)),
        scratch_shapes=[pltpu.VMEM((Cin_p, Lpad), jnp.float32)],
        # j carries the scratch (filled at j==0) -> "arbitrary"; n is parallel.
        compiler_params=_compiler_params(("parallel", "arbitrary"),
                                         vmem_bytes(TL)),
    )(x, w_f, b2)
    return out                                    # (N, Cout, Lo) — NCL layout


def group_norm_leaky_relu_pallas(y, gamma, beta, *, num_groups=2, eps=1e-5,
                                 neg_slope=0.2):
    """Fused GroupNorm(num_groups) + LeakyReLU on (N, C, L), gridded over N."""
    N, C, L = y.shape
    assert C % num_groups == 0
    g2 = gamma.astype(jnp.float32).reshape(C, 1)
    b2 = beta.astype(jnp.float32).reshape(C, 1)

    block_bytes = 2 * C * L * (y.dtype.itemsize + 4) + 3 * C * L * 4 + 4 * C * 8

    out = pl.pallas_call(
        functools.partial(_gn_lrelu_kernel, num_groups=num_groups, eps=eps,
                          neg_slope=neg_slope),
        out_shape=jax.ShapeDtypeStruct((N, C, L), y.dtype),
        grid=(N,),
        in_specs=[
            pl.BlockSpec((1, C, L), lambda n: (n, 0, 0)),
            pl.BlockSpec((C, 1), lambda n: (0, 0)),
            pl.BlockSpec((C, 1), lambda n: (0, 0)),
        ],
        out_specs=pl.BlockSpec((1, C, L), lambda n: (n, 0, 0)),
        compiler_params=_compiler_params(("parallel",), block_bytes),
    )(y, g2, b2)
    return out


def basic_conv1d(x, weight, bias, gamma, beta, *, stride, padding,
                 act_norm=False):
    """Forward of BasicConv1d (transpose=False path).

    The PyTorch forward computes self.activate(self.norm(y)) but discards the
    result and returns the raw conv output, so the GN/LeakyReLU pass is not
    executed here (it is validated separately in __main__).
    """
    del gamma, beta, act_norm
    return conv1d_pallas(x, weight, bias, stride=stride, padding=padding)


# ------------------------------- references ----------------------------------

def _conv_reference(x, weight, bias, stride, padding):
    y = lax.conv_general_dilated(
        x, weight, window_strides=(stride,), padding=[(padding, padding)],
        dimension_numbers=("NCH", "OIH", "NCH"),
        precision=lax.Precision.HIGHEST)
    return y + bias[None, :, None]


def _gn_lrelu_reference(y, gamma, beta, num_groups=2, eps=1e-5, neg_slope=0.2):
    N, C, L = y.shape
    yg = y.reshape(N, num_groups, -1).astype(jnp.float32)
    mean = yg.mean(axis=-1, keepdims=True)
    var = ((yg - mean) ** 2).mean(axis=-1, keepdims=True)
    yn = ((yg - mean) / jnp.sqrt(var + eps)).reshape(N, C, L)
    out = yn * gamma[None, :, None] + beta[None, :, None]
    return jnp.where(out >= 0, out, neg_slope * out)


# --------------------------------- main ---------------------------------------

if __name__ == "__main__":
    key = jax.random.PRNGKey(0)
    ks = jax.random.split(key, 8)

    # BasicConv1d(in_channels=4, out_channels=8, kernel_size=3, stride=1,
    #             padding=1, act_norm=True)
    N, Cin, Cout, K, S, P = 2, 4, 8, 3, 1, 1

    def run_case(kx, kw, kb, L):
        x = jax.random.normal(kx, (N, Cin, L), jnp.float32)
        w = jax.random.normal(kw, (Cout, Cin, K), jnp.float32) / jnp.sqrt(Cin * K)
        b = 0.01 * jax.random.normal(kb, (Cout,), jnp.float32)
        y = jax.block_until_ready(conv1d_pallas(x, w, b, stride=S, padding=P))
        # Reference on the same bf16-rounded operands the kernel feeds the MXU.
        xb = x.astype(jnp.bfloat16).astype(jnp.float32)
        wb = w.astype(jnp.bfloat16).astype(jnp.float32)
        y_ref = _conv_reference(xb, wb, b, S, P)
        Lo = (L + 2 * P - K) // S + 1
        assert y.shape == (N, Cout, Lo)
        assert jnp.allclose(y, y_ref, atol=1e-3, rtol=1e-3), f"conv mismatch (L={L})"
        return x, w, b, y

    # Case 1: single output tile (Lo == TL).
    x, w, b, y = run_case(ks[0], ks[1], ks[2], L=256)
    # Case 2: multi-tile grid with a partial trailing output block.
    run_case(ks[3], ks[4], ks[5], L=640)

    gamma = 1.0 + 0.1 * jax.random.normal(ks[6], (Cout,), jnp.float32)
    beta = 0.05 * jax.random.normal(ks[7], (Cout,), jnp.float32)

    # Module forward (returns the raw conv output, matching PyTorch semantics).
    y_mod = jax.block_until_ready(
        basic_conv1d(x, w, b, gamma, beta, stride=S, padding=P, act_norm=True))
    assert jnp.allclose(y_mod, y), "module forward mismatch vs conv kernel"

    # Validate the fused GroupNorm(2) + LeakyReLU(0.2) kernel on its own (its
    # result is discarded by the module's forward, so it is checked here).
    z = jax.block_until_ready(group_norm_leaky_relu_pallas(y, gamma, beta,
                                                           num_groups=2))
    z_ref = _gn_lrelu_reference(y, gamma, beta, num_groups=2)
    assert jnp.allclose(z, z_ref, atol=1e-3, rtol=1e-3), "groupnorm mismatch"

    print("KERNEL_OK")
</pallas_src>

<mosaic_0001>
module attributes {stable_mosaic.version = 11 : i64} {
  func.func @_conv1d_kernel(%arg0: i32, %arg1: i32, %arg2: memref<1x4x256xf32, #tpu.memory_space<vmem>>, %arg3: memref<8x24xbf16, #tpu.memory_space<vmem>>, %arg4: memref<8x1xf32, #tpu.memory_space<vmem>>, %arg5: memref<1x8x256xf32, #tpu.memory_space<vmem>>, %arg6: memref<8x512xf32, #tpu.memory_space<vmem>>) attributes {dimension_semantics = [#tpu.dimension_semantics<parallel>, #tpu.dimension_semantics<arbitrary>], iteration_bounds = array<i64: 2, 1>, scalar_prefetch = 0 : i64, scratch_operands = 1 : i64, tpu.core_type = #tpu.core_type<tc>, window_params = [{transform_indices = @transform_0, window_bounds = array<i64: 1, 4, 256>}, {pipeline_mode = #tpu.pipeline_mode<synchronous>, transform_indices = @transform_1, window_bounds = array<i64: 8, 24>}, {pipeline_mode = #tpu.pipeline_mode<synchronous>, transform_indices = @transform_2, window_bounds = array<i64: 8, 1>}, {transform_indices = @transform_3, window_bounds = array<i64: 1, 8, 256>}]} {
    %c0_i32 = arith.constant 0 : i32
    %0 = arith.cmpi eq, %arg1, %c0_i32 : i32
    %1 = arith.extui %0 : i1 to i32
    %c0_i32_0 = arith.constant 0 : i32
    %2 = arith.cmpi ne, %1, %c0_i32_0 : i32
    scf.if %2 {
      %cst_8 = arith.constant 0.000000e+00 : f32
      %19 = vector.broadcast %cst_8 : f32 to vector<8x512xf32>
      %c0_9 = arith.constant 0 : index
      %c0_10 = arith.constant 0 : index
      %20 = vector.load %arg6[%c0_9, %c0_10] : memref<8x512xf32, #tpu.memory_space<vmem>>, vector<8x512xf32>
      tpu.vector_store %arg6[%c0_9, %c0_10], %19 {strides = array<i32>} : memref<8x512xf32, #tpu.memory_space<vmem>>, vector<8x512xf32>,
      %c0_11 = arith.constant 0 : index
      %c0_12 = arith.constant 0 : index
      %c0_13 = arith.constant 0 : index
      %21 = vector.load %arg2[%c0_11, %c0_12, %c0_13] : memref<1x4x256xf32, #tpu.memory_space<vmem>>, vector<1x4x256xf32>
      %22 = vector.shape_cast %21 : vector<1x4x256xf32> to vector<4x256xf32>
      %c0_14 = arith.constant 0 : index
      %c128 = arith.constant 128 : index
      %23 = vector.load %arg6[%c0_14, %c128] : memref<8x512xf32, #tpu.memory_space<vmem>>, vector<4x256xf32>
      tpu.vector_store %arg6[%c0_14, %c128], %22 {strides = array<i32>} : memref<8x512xf32, #tpu.memory_space<vmem>>, vector<4x256xf32>,
    } else {
    }
    %c256_i32 = arith.constant 256 : i32
    %3 = arith.muli %arg1, %c256_i32 : i32
    %4 = tpu.assume_multiple %3, 128 : i32
    %c0 = arith.constant 0 : index
    %5 = arith.index_cast %4 : i32 to index
    %6 = vector.load %arg6[%c0, %5] : memref<8x512xf32, #tpu.memory_space<vmem>>, vector<8x512xf32>
    %7 = vector.extract_strided_slice %6 {offsets = [0, 127], sizes = [8, 256], strides = [1, 1]} : vector<8x512xf32> to vector<8x256xf32>
    %8 = vector.extract_strided_slice %6 {offsets = [0, 128], sizes = [8, 256], strides = [1, 1]} : vector<8x512xf32> to vector<8x256xf32>
    %9 = vector.extract_strided_slice %6 {offsets = [0, 129], sizes = [8, 256], strides = [1, 1]} : vector<8x512xf32> to vector<8x256xf32>
    %10 = tpu.concatenate %7, %8, %9 in 0 : vector<8x256xf32>, vector<8x256xf32>, vector<8x256xf32> -> vector<24x256xf32>
    %c0_1 = arith.constant 0 : index
    %c0_2 = arith.constant 0 : index
    %11 = vector.load %arg3[%c0_1, %c0_2] : memref<8x24xbf16, #tpu.memory_space<vmem>>, vector<8x24xbf16>
    %12 = arith.truncf %10 : vector<24x256xf32> to vector<24x256xbf16>
    %cst = arith.constant dense<0.000000e+00> : vector<8x256xf32>
    %13 = tpu.matmul %11, %12, %cst {dimension_numbers = #tpu.dot_dimension_numbers<[1], [0], [0], [1], [0, 0, 1, 1], [], []>} : vector<8x24xbf16>, vector<24x256xbf16>, vector<8x256xf32> -> vector<8x256xf32>
    %c0_3 = arith.constant 0 : index
    %c0_4 = arith.constant 0 : index
    %14 = vector.load %arg4[%c0_3, %c0_4] : memref<8x1xf32, #tpu.memory_space<vmem>>, vector<8x1xf32>
    %15 = vector.broadcast %14 : vector<8x1xf32> to vector<8x256xf32>
    %16 = arith.addf %13, %15 : vector<8x256xf32>
    %17 = vector.shape_cast %16 : vector<8x256xf32> to vector<1x8x256xf32>
    %c0_5 = arith.constant 0 : index
    %c0_6 = arith.constant 0 : index
    %c0_7 = arith.constant 0 : index
    %18 = vector.load %arg5[%c0_5, %c0_6, %c0_7] : memref<1x8x256xf32, #tpu.memory_space<vmem>>, vector<1x8x256xf32>
    tpu.vector_store %arg5[%c0_5, %c0_6, %c0_7], %17 {strides = array<i32>} : memref<1x8x256xf32, #tpu.memory_space<vmem>>, vector<1x8x256xf32>,
    return
  }
  func.func @transform_0(%arg0: i32, %arg1: i32) -> (i32, i32, i32) {
    %c0_i32 = arith.constant 0 : i32
    %c0_i32_0 = arith.constant 0 : i32
    %c0_i32_1 = arith.constant 0 : i32
    return %arg0, %c0_i32, %c0_i32_0 : i32, i32, i32
  }
  func.func @transform_1(%arg0: i32, %arg1: i32) -> (i32, i32) {
    %c0_i32 = arith.constant 0 : i32
    %c0_i32_0 = arith.constant 0 : i32
    %c0_i32_1 = arith.constant 0 : i32
    return %c0_i32, %c0_i32_0 : i32, i32
  }
  func.func @transform_2(%arg0: i32, %arg1: i32) -> (i32, i32) {
    %c0_i32 = arith.constant 0 : i32
    %c0_i32_0 = arith.constant 0 : i32
    %c0_i32_1 = arith.constant 0 : i32
    return %c0_i32, %c0_i32_0 : i32, i32
  }
  func.func @transform_3(%arg0: i32, %arg1: i32) -> (i32, i32, i32) {
    %c0_i32 = arith.constant 0 : i32
    %c0_i32_0 = arith.constant 0 : i32
    return %arg0, %c0_i32, %arg1 : i32, i32, i32
  }
}

</mosaic_0001>

<llo_original>
// kernel: tpu_custom_call.1
$region0: #{tpu_custom_call.1}
  #allocation0 [shape = 'u32[]', space=smem, size = 0x4, offset = 0x4, fixed_abs, tag = 'smem constant byte address 0x4 - core index']
  #allocation1 [shape = 'u32[144,128]{1,0:T(1,128)}', space=vmem, size = 0x12000, scoped, tag = 'internal scratch']
  #allocation2 [shape = 'f32[8,512]{1,0:T(8,128)}', space=vmem, size = 0x4000, scoped, tag = 'scratch operand']
  %s0 = inlined_call_operand.hbm [shape: f32[2,4,256], index: 0, kind: input, shape index: {}]
  %s1 = inlined_call_operand.vmem [shape: bf16[8,24], index: 1, kind: input, shape index: {}]
  %s2 = inlined_call_operand.vmem [shape: f32[8,1], index: 2, kind: input, shape index: {}]
  %s3 = inlined_call_operand.hbm [shape: f32[2,8,256], index: 3, kind: output, shape index: {}]
  %s4 = sld [smem:[#allocation0]]
  $region53: #{tpu_custom_call.1} parent=0
    _
  %s6 = ssub.s32 1, %s4
  %s7 = scalar_select 0, %s6, %s4
  $region1: #{tpu_custom_call.1} parent=0
    #allocation3 [shape = 'u8[8192]{0}', space=vmem, size = 0x2000, scoped, tag = 'input window, operand 0']
    #allocation4 [shape = 's32[2]{0}', space=sflag, size = 0x8, scoped, tag = 'scoped memory for tpu_custom_call.1']
    #allocation5 [shape = 's32[2]{0}', space=sflag, size = 0x8, scoped, tag = 'scoped memory for tpu_custom_call.1']
    #allocation6 [shape = 'u8[16384]{0}', space=vmem, size = 0x4000, scoped, tag = 'output window, operand 0']
    %8 = vsyncpa [#allocation4], 0
    %s9 = scalar_lea.sflag [#allocation4], 1
    %10 = vsyncpa %s9, 0
    %11 = vsyncpa [#allocation5], 0
    %s12 = scalar_lea.sflag [#allocation5], 1
    %13 = vsyncpa %s12, 0
    loop: start=0, step=1, limit=4
    $region2: #{tpu_custom_call.1} parent=1 // loop_pre_header
      _
    $region3: #{tpu_custom_call.1} parent=1 // loop_header
      %s15 = sphi 0, %s19
      %p16 = scmp.ge.s32.totalorder %s15, 4
      %s22 = sphi 0, %s34
      %s23 = sphi 0, %s30
      %s24 = sphi 0, %s22
      %s25 = sphi 0, %s23
      %s26 = sphi 0, %s24
      %s27 = sphi 0, %s25
      %s37 = sphi 0, %s39
      %s40 = sphi 0, %s37
      %s41 = sphi 0, %s40
      %s57 = sphi 0, %s41
      %s61 = sphi 0, %s61
      %s63 = sphi 0, %s61
      %s64 = sphi 0, %s63
      %s78 = sphi 0, %s64
      %s82 = sphi 0, %s82
      %s84 = sphi 0, %s82
      %s85 = sphi 0, %s84
      %s99 = sphi 0, %s85
      %s107 = sphi 0, %s109
      %s110 = sphi 0, %s107
      %s111 = sphi 0, %s110
      %s127 = sphi 0, %s111
    $region4: #{tpu_custom_call.1} parent=1 // loop_header_branch
      %18 = sbr.rel (%p16) target = $region8
    $region5: #{tpu_custom_call.1} parent=1 // loop_body
      %s20 = ssub.s32 %s15, 1
      %s21 = ssub.s32 %s15, 2
      %s28 = sadd.s32 1, %s23
      %p29 = scmp.ge.s32.totalorder %s28, 1
      %s30 = scalar_select %p29, 0, %s28
      %s31 = sadd.s32 1, %s22
      %s32 = scalar_select %p29, %s31, %s22
      %p33 = scmp.ge.s32.totalorder %s32, 2
      %s34 = scalar_select %p33, 0, %s32
      %s35 = ssub.s32 %s22, %s34
      %p36 = scmp.eq.s32.totalorder %s35, 0
      %s38 = sadd.s32 %s37, 1
      %s39 = scalar_select %p36, %s37, %s38
      %p42 = pneg %p36
      %p43 = scmp.eq.s32.totalorder %s15, 1
      %p44 = por %p42, %p43
      %p45 = scmp.ne.s32.totalorder %s37, %s40
      %p46 = scmp.eq.s32.totalorder %s15, 0
      %p47 = por %p45, %p46
      %p48 = scmp.ne.s32.totalorder %s37, %s40
      %p49 = scmp.eq.s32.totalorder %s20, 1
      %p50 = por %p48, %p49
      %p51 = scmp.ne.s32.totalorder %s40, %s41
      %p52 = scmp.eq.s32.totalorder %s20, 0
      %p53 = por %p51, %p52
      %p54 = scmp.ne.s32.totalorder %s40, %s41
      %p55 = scmp.eq.s32.totalorder %s21, 1
      %p56 = por %p54, %p55
      %p58 = scmp.ne.s32.totalorder %s41, %s57
      %p59 = scmp.eq.s32.totalorder %s21, 0
      %p60 = por %p58, %p59
      %s62 = sadd.s32 %s61, 1
      %p65 = scmp.eq.s32.totalorder %s15, 1
      %p66 = scmp.ne.s32.totalorder %s61, %s63
      %p67 = scmp.eq.s32.totalorder %s15, 0
      %p68 = por %p66, %p67
      %p69 = scmp.ne.s32.totalorder %s61, %s63
      %p70 = scmp.eq.s32.totalorder %s20, 1
      %p71 = por %p69, %p70
      %p72 = scmp.ne.s32.totalorder %s63, %s64
      %p73 = scmp.eq.s32.totalorder %s20, 0
      %p74 = por %p72, %p73
      %p75 = scmp.ne.s32.totalorder %s63, %s64
      %p76 = scmp.eq.s32.totalorder %s21, 1
      %p77 = por %p75, %p76
      %p79 = scmp.ne.s32.totalorder %s64, %s78
      %p80 = scmp.eq.s32.totalorder %s21, 0
      %p81 = por %p79, %p80
      %s83 = sadd.s32 %s82, 1
      %p86 = scmp.eq.s32.totalorder %s15, 1
      %p87 = scmp.ne.s32.totalorder %s82, %s84
      %p88 = scmp.eq.s32.totalorder %s15, 0
      %p89 = por %p87, %p88
      %p90 = scmp.ne.s32.totalorder %s82, %s84
      %p91 = scmp.eq.s32.totalorder %s20, 1
      %p92 = por %p90, %p91
      %p93 = scmp.ne.s32.totalorder %s84, %s85
      %p94 = scmp.eq.s32.totalorder %s20, 0
      %p95 = por %p93, %p94
      %p96 = scmp.ne.s32.totalorder %s84, %s85
      %p97 = scmp.eq.s32.totalorder %s21, 1
      %p98 = por %p96, %p97
      %p100 = scmp.ne.s32.totalorder %s85, %s99
      %p101 = scmp.eq.s32.totalorder %s21, 0
      %p102 = por %p100, %p101
      %s103 = ssub.s32 %s22, %s34
      %s104 = ssub.s32 %s23, %s30
      %s105 = sor.u32 %s103, %s104
      %p106 = scmp.eq.s32.totalorder %s105, 0
      %s108 = sadd.s32 %s107, 1
      %s109 = scalar_select %p106, %s107, %s108
      %p112 = pneg %p106
      %p113 = scmp.eq.s32.totalorder %s15, 1
      %p114 = por %p112, %p113
      %p115 = scmp.ne.s32.totalorder %s107, %s110
      %p116 = scmp.eq.s32.totalorder %s15, 0
      %p117 = por %p115, %p116
      %p118 = scmp.ne.s32.totalorder %s107, %s110
      %p119 = scmp.eq.s32.totalorder %s20, 1
      %p120 = por %p118, %p119
      %p121 = scmp.ne.s32.totalorder %s110, %s111
      %p122 = scmp.eq.s32.totalorder %s20, 0
      %p123 = por %p121, %p122
      %p124 = scmp.ne.s32.totalorder %s110, %s111
      %p125 = scmp.eq.s32.totalorder %s21, 1
      %p126 = por %p124, %p125
      %p128 = scmp.ne.s32.totalorder %s111, %s127
      %p129 = scmp.eq.s32.totalorder %s21, 0
      %p130 = por %p128, %p129
      %p131 = scmp.le.s32.totalorder 1, %s15
      %p132 = scmp.lt.s32.totalorder %s15, 3
      %p133 = pnand %p131, %p132
      %p134 = pneg %p133
      // Predicated region
      $region9: #{tpu_custom_call.1} parent=5 // pred_check
        _
      $region10: #{tpu_custom_call.1} parent=5 // pred_check_branch
        %136 = sbr.rel (%p133) target = $region12
      $region11: #{tpu_custom_call.1} parent=5 // pred_region
        %s137 = ssub.s32 %s15, 1
        // Predicated region
        $region13: #{tpu_custom_call.1} parent=11 // pred_check
          %p138 = pneg %p74
        $region14: #{tpu_custom_call.1} parent=11 // pred_check_branch
          %140 = sbr.rel (%p138) target = $region16
        $region15: #{tpu_custom_call.1} parent=11 // pred_region
          _
        $region16: #{tpu_custom_call.1} parent=11 // pred_fallthru
          _
        // Predicated region
        $region17: #{tpu_custom_call.1} parent=11 // pred_check
          %p141 = pneg %p95
        $region18: #{tpu_custom_call.1} parent=11 // pred_check_branch
          %143 = sbr.rel (%p141) target = $region20
        $region19: #{tpu_custom_call.1} parent=11 // pred_region
          _
        $region20: #{tpu_custom_call.1} parent=11 // pred_fallthru
          _
      $region12: #{tpu_custom_call.1} parent=5 // pred_fallthru
        _
      %p144 = scmp.lt.s32.totalorder %s15, 2
      // Predicated region
      $region21: #{tpu_custom_call.1} parent=5 // pred_check
        %p145 = pneg %p144
      $region22: #{tpu_custom_call.1} parent=5 // pred_check_branch
        %147 = sbr.rel (%p145) target = $region24
      $region23: #{tpu_custom_call.1} parent=5 // pred_region
        // Predicated region
        $region25: #{tpu_custom_call.1} parent=23 // pred_check
          %p148 = pneg %p47
        $region26: #{tpu_custom_call.1} parent=23 // pred_check_branch
          %150 = sbr.rel (%p148) target = $region28
        $region27: #{tpu_custom_call.1} parent=23 // pred_region
          %s151 = sand.u32 %s37, 1
          %s152 = scalar_lea.sflag [#allocation4], %s151
          %s153 = sand.u32 %s37, 1
          %s154 = smul.addr %s153, 8
          %s155 = scalar_lea.vmem [#allocation3], %s154
          %s157 = ssub.s32 128, 128
          %158 = vsyncadd %s152, %s157
          %s159 = smul.addr %s22, 2
          %s160 = smul.addr %s159, 64
          %s161 = scalar_lea.hbm %s0, %s160
          %s163 = sshll.u32 %s155, 4
          %s164 = int_to_ptr.vmem [resolvable:$true] %s163
          %166 = dma.hbm_to_vmem [thread:$0]  %s161, 128, %s164, %s152
        $region28: #{tpu_custom_call.1} parent=23 // pred_fallthru
          _
      $region24: #{tpu_custom_call.1} parent=5 // pred_fallthru
        _
      %p167 = scmp.le.s32.totalorder 1, %s15
      %p168 = scmp.lt.s32.totalorder %s15, 3
      %p169 = pnand %p167, %p168
      %p170 = pneg %p169
      // Predicated region
      $region29: #{tpu_custom_call.1} parent=5 // pred_check
        _
      $region30: #{tpu_custom_call.1} parent=5 // pred_check_branch
        %172 = sbr.rel (%p169) target = $region32
      $region31: #{tpu_custom_call.1} parent=5 // pred_region
        %s173 = ssub.s32 %s15, 1
        %s174 = sand.u32 %s40, 1
        %s175 = scalar_lea.sflag [#allocation4], %s174
        %s176 = sand.u32 %s40, 1
        %s177 = smul.addr %s176, 8
        %s178 = scalar_lea.vmem [#allocation3], %s177
        // Predicated region
        $region33: #{tpu_custom_call.1} parent=31 // pred_check
          %p179 = pneg %p53
        $region34: #{tpu_custom_call.1} parent=31 // pred_check_branch
          %181 = sbr.rel (%p179) target = $region36
        $region35: #{tpu_custom_call.1} parent=31 // pred_region
          %182 = dma.done %s175, 128
        $region36: #{tpu_custom_call.1} parent=31 // pred_fallthru
          _
        %s183 = sand.u32 %s40, 1
        %s184 = scalar_lea.sflag [#allocation4], %s183
        %s185 = sand.u32 %s40, 1
        %s186 = smul.addr %s185, 8
        %s187 = scalar_lea.vmem [#allocation3], %s186
        %p188 = pneg %p53
        %p189 = pneg %p50
        %p190 = pneg %p74
        %p191 = pneg %p71
        %p192 = pneg %p95
        %p193 = pneg %p92
        %p194 = pneg %p123
        %p195 = pneg %p120
        %s196 = sand.u32 %s110, 1
        %s197 = scalar_lea.sflag [#allocation5], %s196
        %s198 = sand.u32 %s110, 1
        %s199 = smul.addr %s198, 16
        %s200 = scalar_lea.vmem [#allocation6], %s199
        %s201 = smul.u32 2, %s25
        %p203 = scmp.eq.s32.totalorder %s25, 0
        // Predicated region
        $region37: #{tpu_custom_call.1} parent=31 // pred_check
          %p204 = pneg %p203
        $region38: #{tpu_custom_call.1} parent=31 // pred_check_branch
          %206 = sbr.rel (%p204) target = $region40
        $region39: #{tpu_custom_call.1} parent=31 // pred_region
          %207 = vst [vmem:[#allocation2] sm:$0xff] 0.0
          %208 = vst [vmem:[#allocation2 + $0x8] sm:$0xff] 0.0
          %209 = vst [vmem:[#allocation2 + $0x10] sm:$0xff] 0.0
          %210 = vst [vmem:[#allocation2 + $0x18] sm:$0xff] 0.0
          %v211 = vld [vmem:[%s178] sm:$0xff]
          %v213 = vcombine.high %v211, %v211
          %215 = vst [vmem:[#allocation2 + $0x8] sm:$0xf] %v211
          %216 = vst [vmem:[#allocation2 + $0x10] sm:$0xf] %v213
        $region40: #{tpu_custom_call.1} parent=31 // pred_fallthru
          _
        %s217 = smul.u32 %s25, 256
        %s218 = sshra.s32 %s217, 7
        %s219 = sand.u32 %s217, 127
        %s220 = smul.addr %s218, 8
        %s221 = scalar_lea.vmem [#allocation2], %s220
        %v222 = vld [vmem:[%s221] sm:$0xff]
        %v223 = vld [vmem:[%s221 + $0x8] sm:$0xff]
        %v224 = vld [vmem:[%s221 + $0x10] sm:$0xff]
        %v225 = vld [vmem:[%s221 + $0x18] sm:$0xff]
        %228 = vrot.lane.b32.xlu0 %v223, 127
        %v229 = vpop.permute.xlu0 %228
        %230 = vrot.lane.b32.xlu0 %v224, 127
        %v231 = vpop.permute.xlu0 %230
        %vm232 = vcmask 1039360
        %v233 = vsel %vm232, %v229, %v231
        %238 = vrot.lane.b32.xlu0 %v223, 126
        %v239 = vpop.permute.xlu0 %238
        %240 = vrot.lane.b32.xlu0 %v224, 126
        %v241 = vpop.permute.xlu0 %240
        %242 = vrot.lane.b32.xlu0 %v225, 126
        %v243 = vpop.permute.xlu0 %242
        %vm244 = vcmask 1031168
        %v245 = vsel %vm244, %v239, %v241
        %v246 = vsel %vm244, %v241, %v243
        %v250 = vld [vmem:[%s1] sm:$0xf]
        %v251 = vpack.c.bf16 %v229, %v222
        %v252 = vpack.c.bf16 %v233, %v223
        %v253 = vpack.c.bf16 %v231, %v224
        %v254 = vpack.c.bf16 %v239, %v239
        %v255 = vpack.c.bf16 %v245, %v245
        %v256 = vpack.c.bf16 %v246, %v246
        %v257 = vld [vmem:[%s2] sm:$0xff]
        %259 = vset.pattern.permute.xlu0 0
        %260 = vperm.xlu0 %259, %v257
        %v261 = vpop.permute.xlu0 %260
        %269 = vrot.lane.b32.xlu0 %v251, 1
        %v270 = vpop.permute.xlu0 %269
        %271 = vrot.lane.b32.xlu0 %v252, 1
        %v272 = vpop.permute.xlu0 %271
        %273 = vrot.lane.b32.xlu0 %v253, 1
        %v274 = vpop.permute.xlu0 %273
        %275 = vrot.lane.b32.xlu0 %v254, 1
        %v276 = vpop.permute.xlu0 %275
        %277 = vrot.lane.b32.xlu0 %v255, 1
        %v278 = vpop.permute.xlu0 %277
        %279 = vrot.lane.b32.xlu0 %v256, 1
        %v280 = vpop.permute.xlu0 %279
        %vm281 = vcmask 7168
        %v282 = vsel %vm281, %v270, %v272
        %v283 = vsel %vm281, %v272, %v274
        %v284 = vsel %vm281, %v276, %v278
        %v285 = vsel %vm281, %v278, %v280
        %vm288 = vcmask 195584
        %v290 = vsel %vm288, %v250, 0
        %vm292 = vcmask 1043456
        %v294 = vsel %vm292, %v284, 0
        %v297 = vsel %vm292, %v285, 0
        %299 = vmatprep.subr.bf16.mxu0 %v283
        %300 = vmatpush1.bf16.msra.mxu0 %v282
        %301 = vmatprep.subr.bf16.mxu0 %v297
        %302 = vmatpush1.bf16.msra.mxu0 %v294
        %303 = vmatprep.subr.bf16.mxu0 0
        %304 = vmatpush1.bf16.msra.mxu0 0
        %305 = vmatprep.subr.bf16.mxu0 0
        %306 = vmatpush1.bf16.msra.mxu0 0
        %307 = vmatprep.subr.bf16.mxu0 0
        %308 = vmatpush1.bf16.msra.mxu0 0
        %309 = vmatprep.subr.bf16.mxu0 0
        %310 = vmatpush1.bf16.msra.mxu0 0
        %311 = vmatprep.subr.bf16.mxu0 0
        %312 = vmatpush1.bf16.msra.mxu0 0
        %313 = vmatprep.subr.bf16.mxu0 0
        %314 = vmatpush1.bf16.msra.mxu0 0
        %315 = vmatprep.subr.bf16.mxu0 0
        %316 = vmatpush1.bf16.msra.mxu0 0
        %317 = vmatprep.subr.bf16.mxu0 0
        %318 = vmatpush1.bf16.msra.mxu0 0
        %319 = vmatprep.subr.bf16.mxu0 0
        %320 = vmatpush1.bf16.msra.mxu0 0
        %321 = vmatprep.subr.bf16.mxu0 0
        %322 = vmatpush1.bf16.msra.mxu0 0
        %323 = vmatprep.subr.bf16.mxu0 0
        %324 = vmatpush1.bf16.msra.mxu0 0
        %325 = vmatprep.subr.bf16.mxu0 0
        %326 = vmatpush1.bf16.msra.mxu0 0
        %327 = vmatprep.subr.bf16.mxu0 0
        %328 = vmatpush1.bf16.msra.mxu0 0
        %329 = vmatprep.subr.bf16.mxu0 0
        %330 = vmatpush1.bf16.msra.mxu0 0
        %331 = vmatprep.mubr.bf16.mxu0 0
        %332 = vmatmul.mubr.bf16.gmra.mrb[0].mxu0 %v290
        %v333 = vpop.f32.mrb[0].mxu0
        %v334 = vadd.f32 %v261, %v333
        %v335 = vpop.f32.mrb[0].mxu0
        %v336 = vadd.f32 %v261, %v335
        %v337 = vpop.f32.mrb[0].mxu0
        %v338 = vpop.f32.mrb[0].mxu0
        %339 = vdwg.mxu0
        %340 = vst [vmem:[%s200] sm:$0xff] %v334
        %341 = vst [vmem:[%s200 + $0x8] sm:$0xff] %v336
        %s342 = sand.u32 %s110, 1
        %s343 = scalar_lea.sflag [#allocation5], %s342
        %s344 = sand.u32 %s110, 1
        %s345 = smul.addr %s344, 16
        %s346 = scalar_lea.vmem [#allocation6], %s345
        // Predicated region
        $region41: #{tpu_custom_call.1} parent=31 // pred_check
          %p347 = pneg %p120
        $region42: #{tpu_custom_call.1} parent=31 // pred_check_branch
          %349 = sbr.rel (%p347) target = $region44
        $region43: #{tpu_custom_call.1} parent=31 // pred_region
          %s350 = smul.u32 2, %s25
          %s352 = ssub.s32 256, 256
          %353 = vsyncadd %s343, %s352
          %s354 = smul.addr %s24, 2
          %s355 = sadd.s32 %s350, %s354
          %s356 = smul.addr %s355, 128
          %s357 = scalar_lea.hbm %s3, %s356
          %s359 = sshll.u32 %s346, 4
          %s360 = int_to_ptr.vmem [resolvable:$true] %s359
          %362 = dma.vmem_to_hbm [thread:$0]  %s360, 256, %s357, %s343
        $region44: #{tpu_custom_call.1} parent=31 // pred_fallthru
          _
      $region32: #{tpu_custom_call.1} parent=5 // pred_fallthru
        _
      %p363 = scmp.le.s32.totalorder 2, %s15
      // Predicated region
      $region45: #{tpu_custom_call.1} parent=5 // pred_check
        %p364 = pneg %p363
      $region46: #{tpu_custom_call.1} parent=5 // pred_check_branch
        %366 = sbr.rel (%p364) target = $region48
      $region47: #{tpu_custom_call.1} parent=5 // pred_region
        %s367 = ssub.s32 %s15, 2
        // Predicated region
        $region49: #{tpu_custom_call.1} parent=47 // pred_check
          %p368 = pneg %p126
        $region50: #{tpu_custom_call.1} parent=47 // pred_check_branch
          %370 = sbr.rel (%p368) target = $region52
        $region51: #{tpu_custom_call.1} parent=47 // pred_region
          %s371 = sand.u32 %s111, 1
          %s372 = scalar_lea.sflag [#allocation5], %s371
          %s373 = sand.u32 %s111, 1
          %s374 = smul.addr %s373, 16
          %s375 = scalar_lea.vmem [#allocation6], %s374
          %376 = dma.done %s372, 256
        $region52: #{tpu_custom_call.1} parent=47 // pred_fallthru
          _
      $region48: #{tpu_custom_call.1} parent=5 // pred_fallthru
        _
    $region6: #{tpu_custom_call.1} parent=1 // loop_footer
      %s19 = sadd.s32 1, %s15
    $region7: #{tpu_custom_call.1} parent=1 // loop_footer_branch
      %14 = sbr.rel target = $region3
    $region8: #{tpu_custom_call.1} parent=1 // loop_exit
      _
    %377 = vsyncpa [#allocation4], 1
    %s378 = scalar_lea.sflag [#allocation4], 1
    %379 = vsyncpa %s378, 1
    %380 = vsyncpa [#allocation5], 1
    %s381 = scalar_lea.sflag [#allocation5], 1
    %382 = vsyncpa %s381, 1

</llo_original>
